<compile_context>
chip_gen: v7x
topology: tpu7x:2x2x1
jax: 0.10.0
libtpu: 0.0.40
codegen_flags: <defaults>
</compile_context>

<pallas_src>
import jax
import jax.numpy as jnp
from jax import lax
from jax.experimental import pallas as pl
from jax.experimental.pallas import tpu as pltpu

_LANE = 128
_SUBLANE = 8


def _linear_kernel(x_ref, w_ref, b_ref, o_ref):
    # x_ref: (TB, D_in)   w_ref: (TN, D_in)  (PyTorch layout; contract on dim 1)
    # b_ref: (1, TN)      o_ref: (TB, TN)
    acc = lax.dot_general(
        x_ref[...], w_ref[...],
        dimension_numbers=(((1,), (1,)), ((), ())),
        preferred_element_type=jnp.float32)
    o_ref[...] = (acc + b_ref[...].astype(jnp.float32)).astype(o_ref.dtype)


def _round_up(x, m):
    return (x + m - 1) // m * m


def _vmem_capacity_bytes():
    """Physical per-core VMEM: 128 MiB on v5e/v6e, 64 MiB per TC on v7x."""
    try:
        cap = int(getattr(pltpu.get_tpu_info(), "vmem_capacity_bytes", 0))
        if cap > 0:
            return cap
    except Exception:
        pass
    return 64 * 1024 * 1024  # conservative fallback (v7x per-TC)


def mlp_head_forward(x, weight, bias, *, tile_b=None, tile_n=None,
                     force_pallas=False):
    """y = x @ weight.T + bias   (weight in PyTorch layout (out_dim, in_dim))."""
    B, D_in = x.shape
    D_out, D_in_w = weight.shape
    assert D_in_w == D_in
    assert bias.shape == (D_out,)

    # Tiny heads: pallas_call fixed overhead + 128-lane padding dwarfs the GEMM.
    if not force_pallas and B * D_out * D_in < (1 << 18):
        return (jnp.dot(x, weight.T) + bias).astype(x.dtype)

    itemsize = jnp.dtype(x.dtype).itemsize
    # Lane-dense output stores: only the OUTPUT is padded to a 128 multiple
    # (no per-call jnp.pad of the weight/bias); pad columns sliced off below.
    D_out_p = _round_up(D_out, _LANE)

    # ---- generation-aware VMEM budgets -------------------------------------
    vmem_cap = _vmem_capacity_bytes()
    vmem_target = int(vmem_cap * 0.85)   # ~56 MiB (v7x) / ~108 MiB (v5e/v6e)
    w_budget = int(vmem_cap * 0.375)     # ~24 MiB (v7x) / ~48 MiB (v5e/v6e)

    # ---- N tile: 256-aligned (full MXU passes on v6e/v7x, fine on v5e),
    #      sized purely from the weight-slab budget (no hard 512 cap).
    grain = 256 if D_out_p >= 256 else _LANE
    if tile_n is None:
        cap_n = max(grain,
                    (w_budget // max(1, D_in * itemsize)) // grain * grain)
        tile_n = D_out_p if D_out_p <= cap_n else cap_n

    # ---- batch tile: full B when it fits, else up to 512 rows, budgeted from
    #      the VMEM remaining after a double-buffered weight slab.
    if tile_b is None:
        rem = max(vmem_target - 2 * tile_n * (D_in + 1) * itemsize,
                  4 * 1024 * 1024)
        per_row = 2 * (D_in + tile_n) * itemsize   # x + out, double-buffered
        cap_b = max(_SUBLANE, (rem // per_row) // _SUBLANE * _SUBLANE)
        cap_b = min(512, cap_b)
        tile_b = B if B <= cap_b else cap_b

    num_n = pl.cdiv(D_out_p, tile_n)
    num_b = pl.cdiv(B, tile_b)

    # ---- weight/bias buffering: double-buffer (hides the N-tile-switch DMA
    #      bubble) unless two slabs blow the budget (huge heads on v7x).
    w_tile_bytes = tile_n * D_in * itemsize
    if 2 * w_tile_bytes <= w_budget:
        w_kwargs, n_w_bufs = {}, 2                       # default 2-deep pipeline
    else:
        w_kwargs, n_w_bufs = dict(pipeline_mode=pl.Buffered(1)), 1

    vmem_needed = (
        n_w_bufs * w_tile_bytes                 # weight tile(s)
        + n_w_bufs * tile_n * itemsize          # bias tile(s)
        + 2 * tile_b * D_in * itemsize          # x tile, double-buffered
        + 2 * tile_b * tile_n * itemsize        # out tile, double-buffered
    )
    vmem_limit = int(min(vmem_target,
                         max(32 * 1024 * 1024, vmem_needed * 3 // 2)))

    cost = pl.CostEstimate(
        flops=2 * B * D_in * D_out_p,
        transcendentals=0,
        # x is re-read from HBM once per N tile.
        bytes_accessed=int((B * D_in * num_n + D_out * D_in + D_out
                            + B * D_out_p) * itemsize),
    )

    bias2d = bias.reshape(1, D_out)

    if num_n == 1:
        # Single weight tile: 1-D grid over batch so megacore (v7x) shards a
        # non-trivial axis instead of a size-1 leading axis.
        grid = (num_b,)
        in_specs = [
            pl.BlockSpec((tile_b, D_in), lambda i: (i, 0)),
            pl.BlockSpec((tile_n, D_in), lambda i: (0, 0), **w_kwargs),
            pl.BlockSpec((1, tile_n), lambda i: (0, 0), **w_kwargs),
        ]
        out_specs = pl.BlockSpec((tile_b, tile_n), lambda i: (i, 0))
        dims = ("parallel",)
    else:
        # Weight-stationary: N axis outermost, batch innermost -> each weight
        # tile is DMA'd from HBM exactly once and reused across all batch tiles.
        grid = (num_n, num_b)
        in_specs = [
            pl.BlockSpec((tile_b, D_in), lambda j, i: (i, 0)),
            pl.BlockSpec((tile_n, D_in), lambda j, i: (j, 0), **w_kwargs),
            pl.BlockSpec((1, tile_n), lambda j, i: (0, j), **w_kwargs),
        ]
        out_specs = pl.BlockSpec((tile_b, tile_n), lambda j, i: (i, j))
        dims = ("parallel", "parallel")

    out = pl.pallas_call(
        _linear_kernel,
        out_shape=jax.ShapeDtypeStruct((B, D_out_p), x.dtype),
        grid_spec=pltpu.PrefetchScalarGridSpec(
            num_scalar_prefetch=0,
            grid=grid,
            in_specs=in_specs,
            out_specs=out_specs,
        ),
        compiler_params=pltpu.CompilerParams(
            dimension_semantics=dims,
            vmem_limit_bytes=vmem_limit,
        ),
        cost_estimate=cost,
    )(x, weight, bias2d)

    if D_out_p != D_out:
        out = out[:, :D_out]
    return out


def init_mlp_head_params(key, input_dim, output_dim, dtype=jnp.float32):
    """Deterministic init matching nn.Linear's uniform(-1/sqrt(in), 1/sqrt(in))."""
    kw, kb = jax.random.split(key)
    bound = 1.0 / (input_dim ** 0.5)
    weight = jax.random.uniform(kw, (output_dim, input_dim), dtype,
                                minval=-bound, maxval=bound)
    bias = jax.random.uniform(kb, (output_dim,), dtype,
                              minval=-bound, maxval=bound)
    return weight, bias


if __name__ == "__main__":
    key = jax.random.PRNGKey(0)
    k_x1, k_p1, k_x2, k_p2 = jax.random.split(key, 4)

    # Case 1: tiny head (single N tile; D_out padded 16 -> 128 lanes, sliced).
    B1, D_in1, D_out1 = 8, 32, 16
    x1 = jax.random.normal(k_x1, (B1, D_in1), jnp.float32)
    w1, b1 = init_mlp_head_params(k_p1, D_in1, D_out1)
    y1 = jax.block_until_ready(mlp_head_forward(x1, w1, b1, force_pallas=True))
    ref1 = jnp.dot(x1, w1.T, precision=lax.Precision.HIGHEST) + b1
    assert y1.shape == (B1, D_out1)
    assert jnp.allclose(y1, ref1, atol=2e-3, rtol=2e-3)

    # Case 2: multi-N-tile path (forced tile_n=128), non-128-multiple D_out
    # exercises partial trailing weight/bias blocks + padded-column slice.
    B2, D_in2, D_out2 = 24, 96, 300
    x2 = jax.random.normal(k_x2, (B2, D_in2), jnp.float32)
    w2, b2 = init_mlp_head_params(k_p2, D_in2, D_out2)
    y2 = jax.block_until_ready(
        mlp_head_forward(x2, w2, b2, tile_n=128, force_pallas=True))
    ref2 = jnp.dot(x2, w2.T, precision=lax.Precision.HIGHEST) + b2
    assert y2.shape == (B2, D_out2)
    assert jnp.allclose(y2, ref2, atol=2e-3, rtol=2e-3)

    print("KERNEL_OK")
</pallas_src>

<mosaic_0001>
module attributes {stable_mosaic.version = 11 : i64} {
  func.func @_linear_kernel(%arg0: i32, %arg1: memref<8x32xf32, #tpu.memory_space<vmem>>, %arg2: memref<128x32xf32, #tpu.memory_space<vmem>>, %arg3: memref<1x128xf32, #tpu.memory_space<vmem>>, %arg4: memref<8x128xf32, #tpu.memory_space<vmem>>) attributes {dimension_semantics = [#tpu.dimension_semantics<parallel>], iteration_bounds = array<i64: 1>, scalar_prefetch = 0 : i64, scratch_operands = 0 : i64, tpu.core_type = #tpu.core_type<tc>, window_params = [{transform_indices = @transform_0, window_bounds = array<i64: 8, 32>}, {transform_indices = @transform_1, window_bounds = array<i64: 128, 32>}, {transform_indices = @transform_2, window_bounds = array<i64: 1, 128>}, {transform_indices = @transform_3, window_bounds = array<i64: 8, 128>}]} {
    %c0 = arith.constant 0 : index
    %c0_0 = arith.constant 0 : index
    %0 = vector.load %arg1[%c0, %c0_0] : memref<8x32xf32, #tpu.memory_space<vmem>>, vector<8x32xf32>
    %c0_1 = arith.constant 0 : index
    %c0_2 = arith.constant 0 : index
    %1 = vector.load %arg2[%c0_1, %c0_2] : memref<128x32xf32, #tpu.memory_space<vmem>>, vector<128x32xf32>
    %cst = arith.constant dense<0.000000e+00> : vector<8x128xf32>
    %2 = tpu.matmul %0, %1, %cst {dimension_numbers = #tpu.dot_dimension_numbers<[1], [1], [0], [0], [0, 0, 1, 0], [], []>} : vector<8x32xf32>, vector<128x32xf32>, vector<8x128xf32> -> vector<8x128xf32>
    %c0_3 = arith.constant 0 : index
    %c0_4 = arith.constant 0 : index
    %3 = vector.load %arg3[%c0_3, %c0_4] : memref<1x128xf32, #tpu.memory_space<vmem>>, vector<1x128xf32>
    %4 = vector.broadcast %3 : vector<1x128xf32> to vector<8x128xf32>
    %5 = arith.addf %2, %4 : vector<8x128xf32>
    %c0_5 = arith.constant 0 : index
    %c0_6 = arith.constant 0 : index
    %6 = vector.load %arg4[%c0_5, %c0_6] : memref<8x128xf32, #tpu.memory_space<vmem>>, vector<8x128xf32>
    tpu.vector_store %arg4[%c0_5, %c0_6], %5 {strides = array<i32>} : memref<8x128xf32, #tpu.memory_space<vmem>>, vector<8x128xf32>,
    return
  }
  func.func @transform_0(%arg0: i32) -> (i32, i32) {
    %c0_i32 = arith.constant 0 : i32
    %c0_i32_0 = arith.constant 0 : i32
    return %arg0, %c0_i32 : i32, i32
  }
  func.func @transform_1(%arg0: i32) -> (i32, i32) {
    %c0_i32 = arith.constant 0 : i32
    %c0_i32_0 = arith.constant 0 : i32
    %c0_i32_1 = arith.constant 0 : i32
    return %c0_i32, %c0_i32_0 : i32, i32
  }
  func.func @transform_2(%arg0: i32) -> (i32, i32) {
    %c0_i32 = arith.constant 0 : i32
    %c0_i32_0 = arith.constant 0 : i32
    %c0_i32_1 = arith.constant 0 : i32
    return %c0_i32, %c0_i32_0 : i32, i32
  }
  func.func @transform_3(%arg0: i32) -> (i32, i32) {
    %c0_i32 = arith.constant 0 : i32
    %c0_i32_0 = arith.constant 0 : i32
    return %arg0, %c0_i32 : i32, i32
  }
}

</mosaic_0001>

<llo_original>
// kernel: tpu_custom_call.1
$region0: #{tpu_custom_call.1}
  #allocation0 [shape = 'u32[]', space=smem, size = 0x4, offset = 0x4, fixed_abs, tag = 'smem constant byte address 0x4 - core index']
  #allocation1 [shape = 'u32[144,128]{1,0:T(1,128)}', space=vmem, size = 0x12000, scoped, tag = 'internal scratch']
  %s0 = inlined_call_operand.hbm [shape: f32[8,32], index: 0, kind: input, shape index: {}]
  %s1 = inlined_call_operand.hbm [shape: f32[16,32], index: 1, kind: input, shape index: {}]
  %s2 = inlined_call_operand.vmem [shape: f32[1,16], index: 2, kind: input, shape index: {}]
  %s3 = inlined_call_operand.hbm [shape: f32[8,128], index: 3, kind: output, shape index: {}]
  %s4 = sld [smem:[#allocation0]]
  $region30: #{tpu_custom_call.1} parent=0
    _
  %s6 = ssub.s32 1, %s4
  %s7 = scalar_select 0, %s6, %s4
  $region1: #{tpu_custom_call.1} parent=0
    #allocation2 [shape = 'u8[4096]{0}', space=vmem, size = 0x1000, scoped, tag = 'input window, operand 0, single buffered']
    #allocation3 [shape = 's32[1]{0}', space=sflag, size = 0x4, scoped, tag = 'scoped memory for tpu_custom_call.1']
    #allocation4 [shape = 's32[1]{0}', space=sflag, size = 0x4, scoped, tag = 'scoped memory for tpu_custom_call.1']
    #allocation5 [shape = 'u8[65536]{0}', space=vmem, size = 0x10000, scoped, tag = 'input window, operand 1, single buffered']
    #allocation6 [shape = 's32[1]{0}', space=sflag, size = 0x4, scoped, tag = 'scoped memory for tpu_custom_call.1']
    #allocation7 [shape = 'u8[4096]{0}', space=vmem, size = 0x1000, scoped, tag = 'output window, operand 0, single buffered']
    %8 = vsyncpa [#allocation3], 0
    %9 = vsyncpa [#allocation6], 0
    %10 = vsyncpa [#allocation4], 0
    // Predicated region
    $region2: #{tpu_custom_call.1} parent=1 // pred_check
      _
    $region3: #{tpu_custom_call.1} parent=1 // pred_check_branch
      %12 = sbr.rel (0) target = $region5
    $region4: #{tpu_custom_call.1} parent=1 // pred_region
      %s14 = ssub.s32 128, 128
      %15 = vsyncadd [#allocation3], %s14
      %s17 = sshll.u32 [#allocation2], 4
      %s18 = int_to_ptr.vmem [resolvable:$true] %s17
      %20 = dma.hbm_to_vmem [thread:$0]  %s0, 128, %s18, [#allocation3]
    $region5: #{tpu_custom_call.1} parent=1 // pred_fallthru
      _
    // Predicated region
    $region6: #{tpu_custom_call.1} parent=1 // pred_check
      _
    $region7: #{tpu_custom_call.1} parent=1 // pred_check_branch
      %22 = sbr.rel (0) target = $region9
    $region8: #{tpu_custom_call.1} parent=1 // pred_region
      %s24 = ssub.s32 2048, 256
      %25 = vsyncadd [#allocation6], %s24
      %s26 = sshll.u32 [#allocation5], 4
      %s27 = int_to_ptr.vmem [resolvable:$true] %s26
      %32 = dma.hbm_to_vmem [thread:$0]  %s1, 256, %s27, [#allocation6], 128, 128, 8
    $region9: #{tpu_custom_call.1} parent=1 // pred_fallthru
      _
    // Predicated region
    $region10: #{tpu_custom_call.1} parent=1 // pred_check
      _
    $region11: #{tpu_custom_call.1} parent=1 // pred_check_branch
      %34 = sbr.rel (0) target = $region13
    $region12: #{tpu_custom_call.1} parent=1 // pred_region
      _
    $region13: #{tpu_custom_call.1} parent=1 // pred_fallthru
      _
    // Predicated region
    $region14: #{tpu_custom_call.1} parent=1 // pred_check
      _
    $region15: #{tpu_custom_call.1} parent=1 // pred_check_branch
      %36 = sbr.rel (0) target = $region17
    $region16: #{tpu_custom_call.1} parent=1 // pred_region
      %37 = dma.done [#allocation3], 128
    $region17: #{tpu_custom_call.1} parent=1 // pred_fallthru
      _
    // Predicated region
    $region18: #{tpu_custom_call.1} parent=1 // pred_check
      _
    $region19: #{tpu_custom_call.1} parent=1 // pred_check_branch
      %39 = sbr.rel (0) target = $region21
    $region20: #{tpu_custom_call.1} parent=1 // pred_region
      %40 = dma.done [#allocation6], 2048
    $region21: #{tpu_custom_call.1} parent=1 // pred_fallthru
      _
    %v41 = vld [vmem:[#allocation2] sm:$0xff]
    %v42 = vld [vmem:[#allocation5] sm:$0xff]
    %v43 = vld [vmem:[#allocation5 + $0x8] sm:$0xff]
    %v44 = vld [vmem:[#allocation5 + $0x10] sm:$0xff]
    %v45 = vld [vmem:[#allocation5 + $0x18] sm:$0xff]
    %v46 = vld [vmem:[#allocation5 + $0x20] sm:$0xff]
    %v47 = vld [vmem:[#allocation5 + $0x28] sm:$0xff]
    %v48 = vld [vmem:[#allocation5 + $0x30] sm:$0xff]
    %v49 = vld [vmem:[#allocation5 + $0x38] sm:$0xff]
    %v50 = vld [vmem:[#allocation5 + $0x40] sm:$0xff]
    %v51 = vld [vmem:[#allocation5 + $0x48] sm:$0xff]
    %v52 = vld [vmem:[#allocation5 + $0x50] sm:$0xff]
    %v53 = vld [vmem:[#allocation5 + $0x58] sm:$0xff]
    %v54 = vld [vmem:[#allocation5 + $0x60] sm:$0xff]
    %v55 = vld [vmem:[#allocation5 + $0x68] sm:$0xff]
    %v56 = vld [vmem:[#allocation5 + $0x70] sm:$0xff]
    %v57 = vld [vmem:[#allocation5 + $0x78] sm:$0xff]
    %v58 = vld [vmem:[%s2] sm:$0x1]
    %v60 = vlaneseq
    %v61 = vshrl.u32 %v60, 7
    %v62 = vsub.s32 0, %v61
    %v63 = vrot.slane %v58, %v62
    %vm65 = vcmask 261120
    %v67 = vsel %vm65, %v41, 0
    %v70 = vsel %vm65, %v42, 0
    %v73 = vsel %vm65, %v43, 0
    %v76 = vsel %vm65, %v44, 0
    %v79 = vsel %vm65, %v45, 0
    %v82 = vsel %vm65, %v46, 0
    %v85 = vsel %vm65, %v47, 0
    %v88 = vsel %vm65, %v48, 0
    %v91 = vsel %vm65, %v49, 0
    %v94 = vsel %vm65, %v50, 0
    %v97 = vsel %vm65, %v51, 0
    %v100 = vsel %vm65, %v52, 0
    %v103 = vsel %vm65, %v53, 0
    %v106 = vsel %vm65, %v54, 0
    %v109 = vsel %vm65, %v55, 0
    %v112 = vsel %vm65, %v56, 0
    %v115 = vsel %vm65, %v57, 0
    %117 = vmatprep.subr.mxu0 0.0
    %118 = vmatpush1.xpose.msra.mxu0 %v70
    %119 = vmatprep.subr.mxu0 0.0
    %120 = vmatpush1.xpose.msra.mxu0 %v73
    %121 = vmatprep.subr.mxu0 0.0
    %122 = vmatpush1.xpose.msra.mxu0 %v76
    %123 = vmatprep.subr.mxu0 0.0
    %124 = vmatpush1.xpose.msra.mxu0 %v79
    %125 = vmatprep.subr.mxu0 0.0
    %126 = vmatpush1.xpose.msra.mxu0 %v82
    %127 = vmatprep.subr.mxu0 0.0
    %128 = vmatpush1.xpose.msra.mxu0 %v85
    %129 = vmatprep.subr.mxu0 0.0
    %130 = vmatpush1.xpose.msra.mxu0 %v88
    %131 = vmatprep.subr.mxu0 0.0
    %132 = vmatpush1.xpose.msra.mxu0 %v91
    %133 = vmatprep.subr.mxu0 0.0
    %134 = vmatpush1.xpose.msra.mxu0 %v94
    %135 = vmatprep.subr.mxu0 0.0
    %136 = vmatpush1.xpose.msra.mxu0 %v97
    %137 = vmatprep.subr.mxu0 0.0
    %138 = vmatpush1.xpose.msra.mxu0 %v100
    %139 = vmatprep.subr.mxu0 0.0
    %140 = vmatpush1.xpose.msra.mxu0 %v103
    %141 = vmatprep.subr.mxu0 0.0
    %142 = vmatpush1.xpose.msra.mxu0 %v106
    %143 = vmatprep.subr.mxu0 0.0
    %144 = vmatpush1.xpose.msra.mxu0 %v109
    %145 = vmatprep.subr.mxu0 0.0
    %146 = vmatpush1.xpose.msra.mxu0 %v112
    %147 = vmatprep.subr.mxu0 0.0
    %148 = vmatpush1.xpose.msra.mxu0 %v115
    %149 = vmatprep.subr.mxu0 0.0
    %150 = vmatpush1.xpose.msra.mxu0 0.0
    %151 = vmatprep.subr.mxu0 0.0
    %152 = vmatpush1.xpose.msra.mxu0 0.0
    %153 = vmatprep.subr.mxu0 0.0
    %154 = vmatpush1.xpose.msra.mxu0 0.0
    %155 = vmatprep.subr.mxu0 0.0
    %156 = vmatpush1.xpose.msra.mxu0 0.0
    %157 = vmatprep.subr.mxu0 0.0
    %158 = vmatpush1.xpose.msra.mxu0 0.0
    %159 = vmatprep.subr.mxu0 0.0
    %160 = vmatpush1.xpose.msra.mxu0 0.0
    %161 = vmatprep.subr.mxu0 0.0
    %162 = vmatpush1.xpose.msra.mxu0 0.0
    %163 = vmatprep.subr.mxu0 0.0
    %164 = vmatpush1.xpose.msra.mxu0 0.0
    %165 = vmatprep.subr.mxu0 0.0
    %166 = vmatpush1.xpose.msra.mxu0 0.0
    %167 = vmatprep.subr.mxu0 0.0
    %168 = vmatpush1.xpose.msra.mxu0 0.0
    %169 = vmatprep.subr.mxu0 0.0
    %170 = vmatpush1.xpose.msra.mxu0 0.0
    %171 = vmatprep.subr.mxu0 0.0
    %172 = vmatpush1.xpose.msra.mxu0 0.0
    %173 = vmatprep.subr.mxu0 0.0
    %174 = vmatpush1.xpose.msra.mxu0 0.0
    %175 = vmatprep.subr.mxu0 0.0
    %176 = vmatpush1.xpose.msra.mxu0 0.0
    %177 = vmatprep.subr.mxu0 0.0
    %178 = vmatpush1.xpose.msra.mxu0 0.0
    %179 = vmatprep.subr.mxu0 0.0
    %180 = vmatpush1.xpose.msra.mxu0 0.0
    %181 = vmatprep.mubr.f32.mxu0 0.0
    %182 = vmatmul.mubr.f32.gmra.mrb[0].mxu0 %v67
    %v183 = vpop.f32.mrb[0].mxu0
    %v184 = vadd.f32 %v63, %v183
    %v185 = vpop.f32.mrb[0].mxu0
    %186 = vdwg.mxu0
    %187 = vst [vmem:[#allocation7] sm:$0xff] %v184
    // Predicated region
    $region22: #{tpu_custom_call.1} parent=1 // pred_check
      _
    $region23: #{tpu_custom_call.1} parent=1 // pred_check_branch
      %189 = sbr.rel (0) target = $region25
    $region24: #{tpu_custom_call.1} parent=1 // pred_region
      %s191 = ssub.s32 128, 128
      %192 = vsyncadd [#allocation4], %s191
      %s194 = sshll.u32 [#allocation7], 4
      %s195 = int_to_ptr.vmem [resolvable:$true] %s194
      %197 = dma.vmem_to_hbm [thread:$0]  %s195, 128, %s3, [#allocation4]
    $region25: #{tpu_custom_call.1} parent=1 // pred_fallthru
      _
    // Predicated region
    $region26: #{tpu_custom_call.1} parent=1 // pred_check
      _
    $region27: #{tpu_custom_call.1} parent=1 // pred_check_branch
      %199 = sbr.rel (0) target = $region29
    $region28: #{tpu_custom_call.1} parent=1 // pred_region
      %200 = dma.done [#allocation4], 128
    $region29: #{tpu_custom_call.1} parent=1 // pred_fallthru
      _
    %201 = vsyncpa [#allocation3], 1
    %202 = vsyncpa [#allocation6], 1
    %203 = vsyncpa [#allocation4], 1

</llo_original>
